<compile_context>
chip_gen: v7x
topology: tpu7x:2x2x1
jax: 0.10.0
libtpu: 0.0.40
codegen_flags: <defaults>
</compile_context>

<pallas_src>
import numpy as np
import jax
import jax.numpy as jnp
from jax import lax
from jax.experimental import pallas as pl
from jax.experimental.pallas import tpu as pltpu

LABEL_EMB = 2          # label_embedding_size
EPOCH_EMB = 5          # epoch_embedding_size
NUM_LABEL_EMB = 2      # num_label_embedding
NUM_EPOCH_EMB = 100
NUM_FC = 20            # num_fc_nodes
FEAT_DIM = LABEL_EMB + EPOCH_EMB + 2

_STATIC_UNROLL_MAX = 128   # above this, switch to fori_loop (bounds code size / compile time)


# ---------------------------------------------------------------------------
# Pallas kernel
# ---------------------------------------------------------------------------
def mentornet_kernel(x_ref, p_ref, out_ref, ax_ref, hb_ref):
    # x_ref : (bsz, 5) f32  [loss, loss_rev, loss_diff, loss_diff_rev, label]
    # p_ref : (6, 20) f32   row0 base, row1 label-delta, row2 w1_fwd, row3 w1_bwd,
    #                       row4 fc2 weights, row5 lanes0..8 = packed RNN scalars + fc2 bias
    # ax_ref: (bsz, 2) scratch — packed RNN inputs, reused in place as hidden states
    # hb_ref: (bsz, 1) scratch — backward hidden, stored in natural (un-reversed) order
    bsz = x_ref.shape[0]

    # RNN scalars, read ONCE as packed (1,2)/(1,1) vregs (hoisted out of the recurrence).
    w_loss = p_ref[5:6, 0:2]     # [wih_f[0], wih_b[0]]
    w_ld   = p_ref[5:6, 2:4]     # [wih_f[1], wih_b[1]]
    b_in   = p_ref[5:6, 4:6]     # [bih_f+bhh_f, bih_b+bhh_b]
    w_hh   = p_ref[5:6, 6:8]     # [whh_f, whh_b]
    b2     = p_ref[5:6, 8:9]     # fc2 bias

    # Input projection hoisted out of the serial recurrence, lane-packed:
    #   lane 0 -> forward-chain input a_f[t]
    #   lane 1 -> backward-chain input a_b[bsz-1-t]  (columns pre-reversed in the wrapper)
    ax_ref[...] = w_loss * x_ref[:, 0:2] + w_ld * x_ref[:, 2:4] + b_in

    # Bidirectional recurrence: both directions advance with ONE load + ONE FMA +
    # ONE tanh per step.  Row t of ax_ref is consumed then overwritten in place with the
    # packed hidden state (lane 0 = forward hidden in natural order); the backward hidden
    # is additionally written un-reversed into hb_ref.
    h0 = jnp.zeros((1, 2), jnp.float32)
    if bsz <= _STATIC_UNROLL_MAX:
        h = h0
        for t in range(bsz):
            h = jnp.tanh(ax_ref[t:t + 1, :] + w_hh * h)
            ax_ref[t:t + 1, :] = h                              # lane 0 -> h_f[t]
            hb_ref[bsz - 1 - t:bsz - t, :] = h[:, 1:2]          # h_b at natural row
    else:
        def step(t, h):
            h = jnp.tanh(ax_ref[pl.ds(t, 1), :] + w_hh * h)
            ax_ref[pl.ds(t, 1), :] = h
            hb_ref[pl.ds(bsz - 1 - t, 1), :] = h[:, 1:2]
            return h
        lax.fori_loop(0, bsz, step, h0, unroll=8)

    # ---- fc1 + tanh : label select folded to base + label*delta (pure VPU FMAs).
    lab = x_ref[:, 4:5]                                         # (bsz,1) f32 in {0,1}
    pre = (p_ref[0:1, :] + lab * p_ref[1:2, :]
           + ax_ref[:, 0:1] * p_ref[2:3, :]                     # forward hidden
           + hb_ref[...] * p_ref[3:4, :])                       # backward hidden
    hid = jnp.tanh(pre)                                         # (bsz,20)

    # ---- fc2 + sigmoid : N=1 -> VPU multiply + XLU lane reduction (no MXU).
    logits = jnp.sum(hid * p_ref[4:5, :], axis=-1, keepdims=True) + b2
    out_ref[...] = jax.nn.sigmoid(logits)                       # (bsz,1)


# ---------------------------------------------------------------------------
# Wrapper (glue: parameter folding/packing, reshapes, pallas_call)
# ---------------------------------------------------------------------------
def mentornet_forward(params, label, total_epoch, epoch, loss, loss_diff):
    bsz = int(loss.shape[0])
    # NOTE: epoch/total_epoch must be concrete Python scalars (matches int(...) in torch);
    # each distinct ep_idx retraces the wrapper.  Clamp so emb2 lookup never silently
    # clamps out of range (e.g. epoch == total_epoch).
    ep_idx = max(0, min(NUM_EPOCH_EMB - 1, int(100 * epoch / total_epoch)))

    loss = loss.astype(jnp.float32).reshape(bsz)
    ld = loss_diff.astype(jnp.float32).reshape(bsz)
    lab_f = label.reshape(bsz).astype(jnp.float32)

    # Single (bsz,5) activation operand: forward + pre-reversed backward columns + label.
    x = jnp.stack([loss, loss[::-1], ld, ld[::-1], lab_f], axis=1)

    hp = lax.Precision.HIGHEST
    w1 = params['fc1_w'].T                                      # (feat_dim, 20)
    w1a = w1[:LABEL_EMB]                                        # (2,20)  label part
    w1b = w1[LABEL_EMB:LABEL_EMB + EPOCH_EMB]                   # (5,20)  epoch part
    w1_fwd = w1[LABEL_EMB + EPOCH_EMB]                          # (20,)   forward-RNN row
    w1_bwd = w1[LABEL_EMB + EPOCH_EMB + 1]                      # (20,)   backward-RNN row

    folded_label = jnp.dot(params['emb1'], w1a, precision=hp)          # (2,20)
    ep_contrib = jnp.dot(params['emb2'][ep_idx], w1b, precision=hp)    # (20,) batch-independent
    base = folded_label[0] + ep_contrib + params['fc1_b']              # (20,)
    delta = folded_label[1] - folded_label[0]                          # (20,)

    scal = jnp.stack([
        params['rnn_wih_f'][0, 0], params['rnn_wih_b'][0, 0],
        params['rnn_wih_f'][0, 1], params['rnn_wih_b'][0, 1],
        params['rnn_bih_f'][0] + params['rnn_bhh_f'][0],
        params['rnn_bih_b'][0] + params['rnn_bhh_b'][0],
        params['rnn_whh_f'][0, 0], params['rnn_whh_b'][0, 0],
        params['fc2_b'][0],
    ])
    scal_row = jnp.zeros((NUM_FC,), jnp.float32).at[:9].set(scal)

    pblob = jnp.stack(
        [base, delta, w1_fwd, w1_bwd, params['fc2_w'][0], scal_row], axis=0
    ).astype(jnp.float32)                                               # (6,20) single DMA

    vmem = pl.BlockSpec(memory_space=pltpu.MemorySpace.VMEM)

    # Whole-batch-resident, lane-padded VMEM ~= 2 KiB per batch row (x + out + 2 scratch).
    # Raise the scoped limit only when it could matter (v5e default 16 MiB scoped,
    # v7x 64 MiB physical).
    est_bytes = 4 * 128 * 4 * bsz + (64 << 10)
    cp = None
    if est_bytes > (12 << 20):
        cp = pltpu.CompilerParams(vmem_limit_bytes=int(min(2 * est_bytes, 64 << 20)))
    # TODO(synk): for bsz large enough that ~2 KiB/row exceeds physical VMEM (v7x),
    # stream x / scratch in chunks with a manual double buffer instead of whole-batch
    # residency.  Likewise, the v7x 2-TensorCore split of the forward/backward chains
    # (core_map + VMEM_SHARED + core_barrier) is only worthwhile at bsz >> few hundred.

    out = pl.pallas_call(
        mentornet_kernel,
        out_shape=jax.ShapeDtypeStruct((bsz, 1), jnp.float32),
        in_specs=[vmem, vmem],
        out_specs=vmem,
        scratch_shapes=[pltpu.VMEM((bsz, 2), jnp.float32),   # packed RNN inputs / hiddens
                        pltpu.VMEM((bsz, 1), jnp.float32)],  # backward hidden (natural order)
        compiler_params=cp,
    )(x, pblob)

    return out.reshape(bsz)                                   # squeeze(dim=1)


# ---------------------------------------------------------------------------
# Deterministic parameter init (same shapes as the PyTorch module's __init__)
# ---------------------------------------------------------------------------
def init_params(key):
    ks = jax.random.split(key, 12)
    emb1 = 0.5 * jax.random.normal(ks[0], (NUM_LABEL_EMB, LABEL_EMB), jnp.float32)
    emb1 = emb1.at[0].set(0.0)                                 # padding_idx=0
    emb2 = 0.5 * jax.random.normal(ks[1], (NUM_EPOCH_EMB, EPOCH_EMB), jnp.float32)
    emb2 = emb2.at[0].set(0.0)                                 # padding_idx=0
    return {
        'emb1': emb1,
        'emb2': emb2,
        'rnn_wih_f': 0.5 * jax.random.normal(ks[2], (1, 2), jnp.float32),
        'rnn_whh_f': 0.5 * jax.random.normal(ks[3], (1, 1), jnp.float32),
        'rnn_bih_f': 0.1 * jax.random.normal(ks[4], (1,), jnp.float32),
        'rnn_bhh_f': 0.1 * jax.random.normal(ks[5], (1,), jnp.float32),
        'rnn_wih_b': 0.5 * jax.random.normal(ks[6], (1, 2), jnp.float32),
        'rnn_whh_b': 0.5 * jax.random.normal(ks[7], (1, 1), jnp.float32),
        'rnn_bih_b': 0.1 * jax.random.normal(ks[8], (1,), jnp.float32),
        'rnn_bhh_b': 0.1 * jax.random.normal(ks[9], (1,), jnp.float32),
        'fc1_w': 0.3 * jax.random.normal(ks[10], (NUM_FC, FEAT_DIM), jnp.float32),
        'fc1_b': jnp.zeros((NUM_FC,), jnp.float32),
        'fc2_w': 0.3 * jax.random.normal(ks[11], (1, NUM_FC), jnp.float32),
        'fc2_b': jnp.zeros((1,), jnp.float32),
    }


# ---------------------------------------------------------------------------
# Pure-JAX reference (mirrors the PyTorch forward_MentorNet semantics)
# ---------------------------------------------------------------------------
def ref_forward(params, label, total_epoch, epoch, loss, loss_diff):
    bsz = loss.shape[0]
    ep_idx = max(0, min(NUM_EPOCH_EMB - 1, int(100 * epoch / total_epoch)))
    label_emb = params['emb1'][label]                               # (bsz,2)
    epoch_emb = jnp.broadcast_to(params['emb2'][ep_idx], (bsz, EPOCH_EMB))

    x = jnp.stack([loss, loss_diff], axis=1).astype(jnp.float32)    # (bsz,2)

    def run_dir(x_seq, wih, whh, bih, bhh):
        def step(h, xt):
            h = jnp.tanh(wih @ xt + bih + whh @ h + bhh)
            return h, h
        _, hs = lax.scan(step, jnp.zeros((1,), jnp.float32), x_seq)
        return hs[:, 0]                                             # (bsz,)

    hf = run_dir(x, params['rnn_wih_f'], params['rnn_whh_f'],
                 params['rnn_bih_f'], params['rnn_bhh_f'])
    hb = run_dir(x[::-1], params['rnn_wih_b'], params['rnn_whh_b'],
                 params['rnn_bih_b'], params['rnn_bhh_b'])[::-1]
    rnn_out = jnp.stack([hf, hb], axis=1)                           # (bsz,2)

    stacked = jnp.concatenate([label_emb, epoch_emb, rnn_out], axis=1)  # (bsz,9)
    hid = jnp.tanh(stacked @ params['fc1_w'].T + params['fc1_b'])
    v = jax.nn.sigmoid(hid @ params['fc2_w'].T + params['fc2_b'])
    return v[:, 0]


# TODO(synk): the 'threshold' branch (forward_th: (loss_diff < 0).float()) is a one-op
# elementwise path and is not routed through the kernel; only the default 'MentorNet'
# branch is implemented here.

if __name__ == "__main__":
    key = jax.random.PRNGKey(0)
    pkey, k1, k2, k3 = jax.random.split(key, 4)
    params = init_params(pkey)
    total_epoch, epoch = 10, 3

    # bsz=8 exercises the fully-unrolled recurrence; bsz=160 exercises the fori_loop path.
    for bsz in (8, 160):
        kk1 = jax.random.fold_in(k1, bsz)
        kk2 = jax.random.fold_in(k2, bsz)
        kk3 = jax.random.fold_in(k3, bsz)
        label = jax.random.bernoulli(kk1, 0.5, (bsz,)).astype(jnp.int32)  # noisy-or-not flags
        loss = jax.random.normal(kk2, (bsz,), jnp.float32)
        loss_diff = jax.random.normal(kk3, (bsz,), jnp.float32)

        out = mentornet_forward(params, label, total_epoch, epoch, loss, loss_diff)
        out = jax.block_until_ready(out)
        ref = ref_forward(params, label, total_epoch, epoch, loss, loss_diff)
        ref = jax.block_until_ready(ref)

        assert out.shape == (bsz,)
        np.testing.assert_allclose(np.asarray(out), np.asarray(ref), rtol=1e-4, atol=1e-4)

    print("KERNEL_OK")
</pallas_src>

<mosaic_0001>
module attributes {stable_mosaic.version = 11 : i64} {
  func.func @mentornet_kernel(%arg0: memref<8x5xf32, #tpu.memory_space<vmem>>, %arg1: memref<6x20xf32, #tpu.memory_space<vmem>>, %arg2: memref<8x1xf32, #tpu.memory_space<vmem>>, %arg3: memref<8x2xf32, #tpu.memory_space<vmem>>, %arg4: memref<8x1xf32, #tpu.memory_space<vmem>>) attributes {dimension_semantics = [], scalar_prefetch = 0 : i64, scratch_operands = 2 : i64, tpu.core_type = #tpu.core_type<tc>} {
    %c5 = arith.constant 5 : index
    %c0 = arith.constant 0 : index
    %0 = vector.load %arg1[%c5, %c0] : memref<6x20xf32, #tpu.memory_space<vmem>>, vector<1x2xf32>
    %c5_0 = arith.constant 5 : index
    %c2 = arith.constant 2 : index
    %1 = vector.load %arg1[%c5_0, %c2] : memref<6x20xf32, #tpu.memory_space<vmem>>, vector<1x2xf32>
    %c5_1 = arith.constant 5 : index
    %c4 = arith.constant 4 : index
    %2 = vector.load %arg1[%c5_1, %c4] : memref<6x20xf32, #tpu.memory_space<vmem>>, vector<1x2xf32>
    %c5_2 = arith.constant 5 : index
    %c6 = arith.constant 6 : index
    %3 = vector.load %arg1[%c5_2, %c6] : memref<6x20xf32, #tpu.memory_space<vmem>>, vector<1x2xf32>
    %c5_3 = arith.constant 5 : index
    %c8 = arith.constant 8 : index
    %4 = vector.load %arg1[%c5_3, %c8] : memref<6x20xf32, #tpu.memory_space<vmem>>, vector<1x1xf32>
    %c0_4 = arith.constant 0 : index
    %c0_5 = arith.constant 0 : index
    %5 = vector.load %arg0[%c0_4, %c0_5] : memref<8x5xf32, #tpu.memory_space<vmem>>, vector<8x2xf32>
    %6 = vector.broadcast %0 : vector<1x2xf32> to vector<8x2xf32>
    %7 = arith.mulf %6, %5 : vector<8x2xf32>
    %c0_6 = arith.constant 0 : index
    %c2_7 = arith.constant 2 : index
    %8 = vector.load %arg0[%c0_6, %c2_7] : memref<8x5xf32, #tpu.memory_space<vmem>>, vector<8x2xf32>
    %9 = vector.broadcast %1 : vector<1x2xf32> to vector<8x2xf32>
    %10 = arith.mulf %9, %8 : vector<8x2xf32>
    %11 = arith.addf %7, %10 : vector<8x2xf32>
    %12 = vector.broadcast %2 : vector<1x2xf32> to vector<8x2xf32>
    %13 = arith.addf %11, %12 : vector<8x2xf32>
    %c0_8 = arith.constant 0 : index
    %c0_9 = arith.constant 0 : index
    %14 = vector.load %arg3[%c0_8, %c0_9] : memref<8x2xf32, #tpu.memory_space<vmem>>, vector<8x2xf32>
    tpu.vector_store %arg3[%c0_8, %c0_9], %13 {strides = array<i32>} : memref<8x2xf32, #tpu.memory_space<vmem>>, vector<8x2xf32>,
    %cst = arith.constant 0.000000e+00 : f32
    %15 = vector.broadcast %cst : f32 to vector<1x2xf32>
    %c0_10 = arith.constant 0 : index
    %c0_11 = arith.constant 0 : index
    %16 = vector.load %arg3[%c0_10, %c0_11] : memref<8x2xf32, #tpu.memory_space<vmem>>, vector<1x2xf32>
    %17 = arith.mulf %3, %15 : vector<1x2xf32>
    %18 = arith.addf %16, %17 : vector<1x2xf32>
    %19 = math.tanh %18 : vector<1x2xf32>
    %c0_12 = arith.constant 0 : index
    %c0_13 = arith.constant 0 : index
    %20 = vector.load %arg3[%c0_12, %c0_13] : memref<8x2xf32, #tpu.memory_space<vmem>>, vector<1x2xf32>
    tpu.vector_store %arg3[%c0_12, %c0_13], %19 {strides = array<i32>} : memref<8x2xf32, #tpu.memory_space<vmem>>, vector<1x2xf32>,
    %21 = vector.extract_strided_slice %19 {offsets = [0, 1], sizes = [1, 1], strides = [1, 1]} : vector<1x2xf32> to vector<1x1xf32>
    %c7 = arith.constant 7 : index
    %c0_14 = arith.constant 0 : index
    %22 = vector.load %arg4[%c7, %c0_14] : memref<8x1xf32, #tpu.memory_space<vmem>>, vector<1x1xf32>
    tpu.vector_store %arg4[%c7, %c0_14], %21 {strides = array<i32>} : memref<8x1xf32, #tpu.memory_space<vmem>>, vector<1x1xf32>,
    %c1 = arith.constant 1 : index
    %c0_15 = arith.constant 0 : index
    %23 = vector.load %arg3[%c1, %c0_15] : memref<8x2xf32, #tpu.memory_space<vmem>>, vector<1x2xf32>
    %24 = arith.mulf %3, %19 : vector<1x2xf32>
    %25 = arith.addf %23, %24 : vector<1x2xf32>
    %26 = math.tanh %25 : vector<1x2xf32>
    %c1_16 = arith.constant 1 : index
    %c0_17 = arith.constant 0 : index
    %27 = vector.load %arg3[%c1_16, %c0_17] : memref<8x2xf32, #tpu.memory_space<vmem>>, vector<1x2xf32>
    tpu.vector_store %arg3[%c1_16, %c0_17], %26 {strides = array<i32>} : memref<8x2xf32, #tpu.memory_space<vmem>>, vector<1x2xf32>,
    %28 = vector.extract_strided_slice %26 {offsets = [0, 1], sizes = [1, 1], strides = [1, 1]} : vector<1x2xf32> to vector<1x1xf32>
    %c6_18 = arith.constant 6 : index
    %c0_19 = arith.constant 0 : index
    %29 = vector.load %arg4[%c6_18, %c0_19] : memref<8x1xf32, #tpu.memory_space<vmem>>, vector<1x1xf32>
    tpu.vector_store %arg4[%c6_18, %c0_19], %28 {strides = array<i32>} : memref<8x1xf32, #tpu.memory_space<vmem>>, vector<1x1xf32>,
    %c2_20 = arith.constant 2 : index
    %c0_21 = arith.constant 0 : index
    %30 = vector.load %arg3[%c2_20, %c0_21] : memref<8x2xf32, #tpu.memory_space<vmem>>, vector<1x2xf32>
    %31 = arith.mulf %3, %26 : vector<1x2xf32>
    %32 = arith.addf %30, %31 : vector<1x2xf32>
    %33 = math.tanh %32 : vector<1x2xf32>
    %c2_22 = arith.constant 2 : index
    %c0_23 = arith.constant 0 : index
    %34 = vector.load %arg3[%c2_22, %c0_23] : memref<8x2xf32, #tpu.memory_space<vmem>>, vector<1x2xf32>
    tpu.vector_store %arg3[%c2_22, %c0_23], %33 {strides = array<i32>} : memref<8x2xf32, #tpu.memory_space<vmem>>, vector<1x2xf32>,
    %35 = vector.extract_strided_slice %33 {offsets = [0, 1], sizes = [1, 1], strides = [1, 1]} : vector<1x2xf32> to vector<1x1xf32>
    %c5_24 = arith.constant 5 : index
    %c0_25 = arith.constant 0 : index
    %36 = vector.load %arg4[%c5_24, %c0_25] : memref<8x1xf32, #tpu.memory_space<vmem>>, vector<1x1xf32>
    tpu.vector_store %arg4[%c5_24, %c0_25], %35 {strides = array<i32>} : memref<8x1xf32, #tpu.memory_space<vmem>>, vector<1x1xf32>,
    %c3 = arith.constant 3 : index
    %c0_26 = arith.constant 0 : index
    %37 = vector.load %arg3[%c3, %c0_26] : memref<8x2xf32, #tpu.memory_space<vmem>>, vector<1x2xf32>
    %38 = arith.mulf %3, %33 : vector<1x2xf32>
    %39 = arith.addf %37, %38 : vector<1x2xf32>
    %40 = math.tanh %39 : vector<1x2xf32>
    %c3_27 = arith.constant 3 : index
    %c0_28 = arith.constant 0 : index
    %41 = vector.load %arg3[%c3_27, %c0_28] : memref<8x2xf32, #tpu.memory_space<vmem>>, vector<1x2xf32>
    tpu.vector_store %arg3[%c3_27, %c0_28], %40 {strides = array<i32>} : memref<8x2xf32, #tpu.memory_space<vmem>>, vector<1x2xf32>,
    %42 = vector.extract_strided_slice %40 {offsets = [0, 1], sizes = [1, 1], strides = [1, 1]} : vector<1x2xf32> to vector<1x1xf32>
    %c4_29 = arith.constant 4 : index
    %c0_30 = arith.constant 0 : index
    %43 = vector.load %arg4[%c4_29, %c0_30] : memref<8x1xf32, #tpu.memory_space<vmem>>, vector<1x1xf32>
    tpu.vector_store %arg4[%c4_29, %c0_30], %42 {strides = array<i32>} : memref<8x1xf32, #tpu.memory_space<vmem>>, vector<1x1xf32>,
    %c4_31 = arith.constant 4 : index
    %c0_32 = arith.constant 0 : index
    %44 = vector.load %arg3[%c4_31, %c0_32] : memref<8x2xf32, #tpu.memory_space<vmem>>, vector<1x2xf32>
    %45 = arith.mulf %3, %40 : vector<1x2xf32>
    %46 = arith.addf %44, %45 : vector<1x2xf32>
    %47 = math.tanh %46 : vector<1x2xf32>
    %c4_33 = arith.constant 4 : index
    %c0_34 = arith.constant 0 : index
    %48 = vector.load %arg3[%c4_33, %c0_34] : memref<8x2xf32, #tpu.memory_space<vmem>>, vector<1x2xf32>
    tpu.vector_store %arg3[%c4_33, %c0_34], %47 {strides = array<i32>} : memref<8x2xf32, #tpu.memory_space<vmem>>, vector<1x2xf32>,
    %49 = vector.extract_strided_slice %47 {offsets = [0, 1], sizes = [1, 1], strides = [1, 1]} : vector<1x2xf32> to vector<1x1xf32>
    %c3_35 = arith.constant 3 : index
    %c0_36 = arith.constant 0 : index
    %50 = vector.load %arg4[%c3_35, %c0_36] : memref<8x1xf32, #tpu.memory_space<vmem>>, vector<1x1xf32>
    tpu.vector_store %arg4[%c3_35, %c0_36], %49 {strides = array<i32>} : memref<8x1xf32, #tpu.memory_space<vmem>>, vector<1x1xf32>,
    %c5_37 = arith.constant 5 : index
    %c0_38 = arith.constant 0 : index
    %51 = vector.load %arg3[%c5_37, %c0_38] : memref<8x2xf32, #tpu.memory_space<vmem>>, vector<1x2xf32>
    %52 = arith.mulf %3, %47 : vector<1x2xf32>
    %53 = arith.addf %51, %52 : vector<1x2xf32>
    %54 = math.tanh %53 : vector<1x2xf32>
    %c5_39 = arith.constant 5 : index
    %c0_40 = arith.constant 0 : index
    %55 = vector.load %arg3[%c5_39, %c0_40] : memref<8x2xf32, #tpu.memory_space<vmem>>, vector<1x2xf32>
    tpu.vector_store %arg3[%c5_39, %c0_40], %54 {strides = array<i32>} : memref<8x2xf32, #tpu.memory_space<vmem>>, vector<1x2xf32>,
    %56 = vector.extract_strided_slice %54 {offsets = [0, 1], sizes = [1, 1], strides = [1, 1]} : vector<1x2xf32> to vector<1x1xf32>
    %c2_41 = arith.constant 2 : index
    %c0_42 = arith.constant 0 : index
    %57 = vector.load %arg4[%c2_41, %c0_42] : memref<8x1xf32, #tpu.memory_space<vmem>>, vector<1x1xf32>
    tpu.vector_store %arg4[%c2_41, %c0_42], %56 {strides = array<i32>} : memref<8x1xf32, #tpu.memory_space<vmem>>, vector<1x1xf32>,
    %c6_43 = arith.constant 6 : index
    %c0_44 = arith.constant 0 : index
    %58 = vector.load %arg3[%c6_43, %c0_44] : memref<8x2xf32, #tpu.memory_space<vmem>>, vector<1x2xf32>
    %59 = arith.mulf %3, %54 : vector<1x2xf32>
    %60 = arith.addf %58, %59 : vector<1x2xf32>
    %61 = math.tanh %60 : vector<1x2xf32>
    %c6_45 = arith.constant 6 : index
    %c0_46 = arith.constant 0 : index
    %62 = vector.load %arg3[%c6_45, %c0_46] : memref<8x2xf32, #tpu.memory_space<vmem>>, vector<1x2xf32>
    tpu.vector_store %arg3[%c6_45, %c0_46], %61 {strides = array<i32>} : memref<8x2xf32, #tpu.memory_space<vmem>>, vector<1x2xf32>,
    %63 = vector.extract_strided_slice %61 {offsets = [0, 1], sizes = [1, 1], strides = [1, 1]} : vector<1x2xf32> to vector<1x1xf32>
    %c1_47 = arith.constant 1 : index
    %c0_48 = arith.constant 0 : index
    %64 = vector.load %arg4[%c1_47, %c0_48] : memref<8x1xf32, #tpu.memory_space<vmem>>, vector<1x1xf32>
    tpu.vector_store %arg4[%c1_47, %c0_48], %63 {strides = array<i32>} : memref<8x1xf32, #tpu.memory_space<vmem>>, vector<1x1xf32>,
    %c7_49 = arith.constant 7 : index
    %c0_50 = arith.constant 0 : index
    %65 = vector.load %arg3[%c7_49, %c0_50] : memref<8x2xf32, #tpu.memory_space<vmem>>, vector<1x2xf32>
    %66 = arith.mulf %3, %61 : vector<1x2xf32>
    %67 = arith.addf %65, %66 : vector<1x2xf32>
    %68 = math.tanh %67 : vector<1x2xf32>
    %c7_51 = arith.constant 7 : index
    %c0_52 = arith.constant 0 : index
    %69 = vector.load %arg3[%c7_51, %c0_52] : memref<8x2xf32, #tpu.memory_space<vmem>>, vector<1x2xf32>
    tpu.vector_store %arg3[%c7_51, %c0_52], %68 {strides = array<i32>} : memref<8x2xf32, #tpu.memory_space<vmem>>, vector<1x2xf32>,
    %70 = vector.extract_strided_slice %68 {offsets = [0, 1], sizes = [1, 1], strides = [1, 1]} : vector<1x2xf32> to vector<1x1xf32>
    %c0_53 = arith.constant 0 : index
    %c0_54 = arith.constant 0 : index
    %71 = vector.load %arg4[%c0_53, %c0_54] : memref<8x1xf32, #tpu.memory_space<vmem>>, vector<1x1xf32>
    tpu.vector_store %arg4[%c0_53, %c0_54], %70 {strides = array<i32>} : memref<8x1xf32, #tpu.memory_space<vmem>>, vector<1x1xf32>,
    %c0_55 = arith.constant 0 : index
    %c4_56 = arith.constant 4 : index
    %72 = vector.load %arg0[%c0_55, %c4_56] : memref<8x5xf32, #tpu.memory_space<vmem>>, vector<8x1xf32>
    %c0_57 = arith.constant 0 : index
    %c0_58 = arith.constant 0 : index
    %73 = vector.load %arg1[%c0_57, %c0_58] : memref<6x20xf32, #tpu.memory_space<vmem>>, vector<1x20xf32>
    %c1_59 = arith.constant 1 : index
    %c0_60 = arith.constant 0 : index
    %74 = vector.load %arg1[%c1_59, %c0_60] : memref<6x20xf32, #tpu.memory_space<vmem>>, vector<1x20xf32>
    %75 = vector.broadcast %72 : vector<8x1xf32> to vector<8x20xf32>
    %76 = vector.broadcast %74 : vector<1x20xf32> to vector<8x20xf32>
    %77 = arith.mulf %75, %76 : vector<8x20xf32>
    %78 = vector.broadcast %73 : vector<1x20xf32> to vector<8x20xf32>
    %79 = arith.addf %78, %77 : vector<8x20xf32>
    %c0_61 = arith.constant 0 : index
    %c0_62 = arith.constant 0 : index
    %80 = vector.load %arg3[%c0_61, %c0_62] : memref<8x2xf32, #tpu.memory_space<vmem>>, vector<8x1xf32>
    %c2_63 = arith.constant 2 : index
    %c0_64 = arith.constant 0 : index
    %81 = vector.load %arg1[%c2_63, %c0_64] : memref<6x20xf32, #tpu.memory_space<vmem>>, vector<1x20xf32>
    %82 = vector.broadcast %80 : vector<8x1xf32> to vector<8x20xf32>
    %83 = vector.broadcast %81 : vector<1x20xf32> to vector<8x20xf32>
    %84 = arith.mulf %82, %83 : vector<8x20xf32>
    %85 = arith.addf %79, %84 : vector<8x20xf32>
    %c0_65 = arith.constant 0 : index
    %c0_66 = arith.constant 0 : index
    %86 = vector.load %arg4[%c0_65, %c0_66] : memref<8x1xf32, #tpu.memory_space<vmem>>, vector<8x1xf32>
    %c3_67 = arith.constant 3 : index
    %c0_68 = arith.constant 0 : index
    %87 = vector.load %arg1[%c3_67, %c0_68] : memref<6x20xf32, #tpu.memory_space<vmem>>, vector<1x20xf32>
    %88 = vector.broadcast %86 : vector<8x1xf32> to vector<8x20xf32>
    %89 = vector.broadcast %87 : vector<1x20xf32> to vector<8x20xf32>
    %90 = arith.mulf %88, %89 : vector<8x20xf32>
    %91 = arith.addf %85, %90 : vector<8x20xf32>
    %92 = math.tanh %91 : vector<8x20xf32>
    %c4_69 = arith.constant 4 : index
    %c0_70 = arith.constant 0 : index
    %93 = vector.load %arg1[%c4_69, %c0_70] : memref<6x20xf32, #tpu.memory_space<vmem>>, vector<1x20xf32>
    %94 = vector.broadcast %93 : vector<1x20xf32> to vector<8x20xf32>
    %95 = arith.mulf %92, %94 : vector<8x20xf32>
    %cst_71 = arith.constant dense<0.000000e+00> : vector<8xf32>
    %96 = vector.multi_reduction <add>, %95, %cst_71 [1] : vector<8x20xf32> to vector<8xf32>
    %97 = vector.shape_cast %96 : vector<8xf32> to vector<8x1xf32>
    %98 = vector.broadcast %4 : vector<1x1xf32> to vector<8x1xf32>
    %99 = arith.addf %97, %98 : vector<8x1xf32>
    %100 = arith.negf %99 : vector<8x1xf32>
    %101 = math.exp %100 : vector<8x1xf32>
    %cst_72 = arith.constant 1.000000e+00 : f32
    %102 = vector.broadcast %cst_72 : f32 to vector<8x1xf32>
    %103 = arith.addf %102, %101 : vector<8x1xf32>
    %104 = arith.divf %102, %103 : vector<8x1xf32>
    %c0_73 = arith.constant 0 : index
    %c0_74 = arith.constant 0 : index
    %105 = vector.load %arg2[%c0_73, %c0_74] : memref<8x1xf32, #tpu.memory_space<vmem>>, vector<8x1xf32>
    tpu.vector_store %arg2[%c0_73, %c0_74], %104 {strides = array<i32>} : memref<8x1xf32, #tpu.memory_space<vmem>>, vector<8x1xf32>,
    return
  }
}

</mosaic_0001>

<llo_original>
// kernel: tpu_custom_call.1
$region0: #{tpu_custom_call.1}
  #allocation0 [shape = 'u32[]', space=smem, size = 0x4, offset = 0x4, fixed_abs, tag = 'smem constant byte address 0x4 - core index']
  #allocation1 [shape = 'u32[144,128]{1,0:T(1,128)}', space=vmem, size = 0x12000, scoped, tag = 'internal scratch']
  #allocation2 [shape = 'f32[8,2]{1,0:T(8,128)}', space=vmem, size = 0x1000, scoped, tag = 'scratch operand']
  #allocation3 [shape = 'f32[8,1]{1,0:T(8,128)}', space=vmem, size = 0x1000, scoped, tag = 'scratch operand']
  %s0 = inlined_call_operand.hbm [shape: f32[8,5], index: 0, kind: input, shape index: {}]
  %s1 = inlined_call_operand.hbm [shape: f32[6,20], index: 1, kind: input, shape index: {}]
  %s2 = inlined_call_operand.vmem [shape: f32[8,1], index: 2, kind: output, shape index: {}]
  %s3 = sld [smem:[#allocation0]]
  $region26: #{tpu_custom_call.1} parent=0
    _
  %s5 = ssub.s32 1, %s3
  %s6 = scalar_select 0, %s5, %s3
  $region1: #{tpu_custom_call.1} parent=0
    #allocation4 [shape = 'u8[4096]{0}', space=vmem, size = 0x1000, scoped, tag = 'input window, operand 0, single buffered']
    #allocation5 [shape = 's32[1]{0}', space=sflag, size = 0x4, scoped, tag = 'scoped memory for tpu_custom_call.1']
    #allocation6 [shape = 'u8[4096]{0}', space=vmem, size = 0x1000, scoped, tag = 'input window, operand 1, single buffered']
    #allocation7 [shape = 's32[1]{0}', space=sflag, size = 0x4, scoped, tag = 'scoped memory for tpu_custom_call.1']
    %7 = vsyncpa [#allocation5], 0
    %8 = vsyncpa [#allocation7], 0
    // Predicated region
    $region2: #{tpu_custom_call.1} parent=1 // pred_check
      _
    $region3: #{tpu_custom_call.1} parent=1 // pred_check_branch
      %10 = sbr.rel (0) target = $region5
    $region4: #{tpu_custom_call.1} parent=1 // pred_region
      %s12 = ssub.s32 128, 128
      %13 = vsyncadd [#allocation5], %s12
      %s15 = sshll.u32 [#allocation4], 4
      %s16 = int_to_ptr.vmem [resolvable:$true] %s15
      %18 = dma.hbm_to_vmem [thread:$0]  %s0, 128, %s16, [#allocation5]
    $region5: #{tpu_custom_call.1} parent=1 // pred_fallthru
      _
    // Predicated region
    $region6: #{tpu_custom_call.1} parent=1 // pred_check
      _
    $region7: #{tpu_custom_call.1} parent=1 // pred_check_branch
      %20 = sbr.rel (0) target = $region9
    $region8: #{tpu_custom_call.1} parent=1 // pred_region
      %s22 = ssub.s32 128, 128
      %23 = vsyncadd [#allocation7], %s22
      %s25 = sshll.u32 [#allocation6], 4
      %s26 = int_to_ptr.vmem [resolvable:$true] %s25
      %28 = dma.hbm_to_vmem [thread:$0]  %s1, 128, %s26, [#allocation7]
    $region9: #{tpu_custom_call.1} parent=1 // pred_fallthru
      _
    // Predicated region
    $region10: #{tpu_custom_call.1} parent=1 // pred_check
      _
    $region11: #{tpu_custom_call.1} parent=1 // pred_check_branch
      %30 = sbr.rel (0) target = $region13
    $region12: #{tpu_custom_call.1} parent=1 // pred_region
      %31 = dma.done [#allocation5], 128
    $region13: #{tpu_custom_call.1} parent=1 // pred_fallthru
      _
    // Predicated region
    $region14: #{tpu_custom_call.1} parent=1 // pred_check
      _
    $region15: #{tpu_custom_call.1} parent=1 // pred_check_branch
      %33 = sbr.rel (0) target = $region17
    $region16: #{tpu_custom_call.1} parent=1 // pred_region
      %34 = dma.done [#allocation7], 128
    $region17: #{tpu_custom_call.1} parent=1 // pred_fallthru
      _
    %v35 = vld [vmem:[#allocation6 + $0x5] sm:$0x1]
    %v36 = vld [vmem:[#allocation4] sm:$0xff]
    %v37 = vlaneseq
    %v38 = vshrl.u32 %v37, 7
    %v39 = vsub.s32 0, %v38
    %v40 = vrot.slane %v35, %v39
    %v41 = vmul.f32 %v40, %v36
    %43 = vrot.lane.b32.xlu0 %v41, 126
    %v44 = vpop.permute.xlu0 %43
    %v46 = vadd.f32 %v41, %v44
    %48 = vrot.lane.b32.xlu0 %v40, 124
    %v49 = vpop.permute.xlu0 %48
    %v51 = vadd.f32 %v46, %v49
    %vm52 = vcmask 15360
    %53 = vst.msk [vmem:[#allocation2] sm:$0xff] %vm52, %v51
    %v54 = vld [vmem:[#allocation2] sm:$0x1]
    %v55 = vmul.f32 %v35, 0.0
    %57 = vrot.lane.b32.xlu0 %v55, 122
    %v58 = vpop.permute.xlu0 %57
    %v60 = vadd.f32 %v54, %v58
    %v61 = vtanh.pop %v60
    %vm62 = vcmask 8192
    %63 = vst.msk [vmem:[#allocation2] sm:$0x1] %vm62, %v61
    %65 = vrot.lane.b32.xlu0 %v61, 127
    %v66 = vpop.permute.xlu0 %65
    %vm68 = vcmask 0
    %69 = vst.msk [vmem:[#allocation3 + $0x7] sm:$0x1] %vm68, %v66
    %v70 = vld [vmem:[#allocation2 + $0x1] sm:$0x1]
    %71 = vrot.lane.b32.xlu0 %v61, 6
    %v72 = vpop.permute.xlu0 %71
    %v74 = vmul.f32 %v35, %v72
    %76 = vrot.lane.b32.xlu0 %v74, 122
    %v77 = vpop.permute.xlu0 %76
    %v79 = vadd.f32 %v70, %v77
    %v80 = vtanh.pop %v79
    %81 = vst.msk [vmem:[#allocation2 + $0x1] sm:$0x1] %vm62, %v80
    %83 = vrot.lane.b32.xlu0 %v80, 127
    %v84 = vpop.permute.xlu0 %83
    %86 = vst.msk [vmem:[#allocation3 + $0x6] sm:$0x1] %vm68, %v84
    %v87 = vld [vmem:[#allocation2 + $0x2] sm:$0x1]
    %88 = vrot.lane.b32.xlu0 %v80, 6
    %v89 = vpop.permute.xlu0 %88
    %v91 = vmul.f32 %v35, %v89
    %93 = vrot.lane.b32.xlu0 %v91, 122
    %v94 = vpop.permute.xlu0 %93
    %v96 = vadd.f32 %v87, %v94
    %v97 = vtanh.pop %v96
    %98 = vst.msk [vmem:[#allocation2 + $0x2] sm:$0x1] %vm62, %v97
    %100 = vrot.lane.b32.xlu0 %v97, 127
    %v101 = vpop.permute.xlu0 %100
    %103 = vst.msk [vmem:[#allocation3 + $0x5] sm:$0x1] %vm68, %v101
    %v104 = vld [vmem:[#allocation2 + $0x3] sm:$0x1]
    %105 = vrot.lane.b32.xlu0 %v97, 6
    %v106 = vpop.permute.xlu0 %105
    %v108 = vmul.f32 %v35, %v106
    %110 = vrot.lane.b32.xlu0 %v108, 122
    %v111 = vpop.permute.xlu0 %110
    %v113 = vadd.f32 %v104, %v111
    %v114 = vtanh.pop %v113
    %115 = vst.msk [vmem:[#allocation2 + $0x3] sm:$0x1] %vm62, %v114
    %117 = vrot.lane.b32.xlu0 %v114, 127
    %v118 = vpop.permute.xlu0 %117
    %120 = vst.msk [vmem:[#allocation3 + $0x4] sm:$0x1] %vm68, %v118
    %v121 = vld [vmem:[#allocation2 + $0x4] sm:$0x1]
    %122 = vrot.lane.b32.xlu0 %v114, 6
    %v123 = vpop.permute.xlu0 %122
    %v125 = vmul.f32 %v35, %v123
    %127 = vrot.lane.b32.xlu0 %v125, 122
    %v128 = vpop.permute.xlu0 %127
    %v130 = vadd.f32 %v121, %v128
    %v131 = vtanh.pop %v130
    %132 = vst.msk [vmem:[#allocation2 + $0x4] sm:$0x1] %vm62, %v131
    %134 = vrot.lane.b32.xlu0 %v131, 127
    %v135 = vpop.permute.xlu0 %134
    %137 = vst.msk [vmem:[#allocation3 + $0x3] sm:$0x1] %vm68, %v135
    %v138 = vld [vmem:[#allocation2 + $0x5] sm:$0x1]
    %139 = vrot.lane.b32.xlu0 %v131, 6
    %v140 = vpop.permute.xlu0 %139
    %v142 = vmul.f32 %v35, %v140
    %144 = vrot.lane.b32.xlu0 %v142, 122
    %v145 = vpop.permute.xlu0 %144
    %v147 = vadd.f32 %v138, %v145
    %v148 = vtanh.pop %v147
    %149 = vst.msk [vmem:[#allocation2 + $0x5] sm:$0x1] %vm62, %v148
    %151 = vrot.lane.b32.xlu0 %v148, 127
    %v152 = vpop.permute.xlu0 %151
    %154 = vst.msk [vmem:[#allocation3 + $0x2] sm:$0x1] %vm68, %v152
    %v155 = vld [vmem:[#allocation2 + $0x6] sm:$0x1]
    %156 = vrot.lane.b32.xlu0 %v148, 6
    %v157 = vpop.permute.xlu0 %156
    %v159 = vmul.f32 %v35, %v157
    %161 = vrot.lane.b32.xlu0 %v159, 122
    %v162 = vpop.permute.xlu0 %161
    %v164 = vadd.f32 %v155, %v162
    %v165 = vtanh.pop %v164
    %166 = vst.msk [vmem:[#allocation2 + $0x6] sm:$0x1] %vm62, %v165
    %168 = vrot.lane.b32.xlu0 %v165, 127
    %v169 = vpop.permute.xlu0 %168
    %171 = vst.msk [vmem:[#allocation3 + $0x1] sm:$0x1] %vm68, %v169
    %v172 = vld [vmem:[#allocation2 + $0x7] sm:$0x1]
    %173 = vrot.lane.b32.xlu0 %v165, 6
    %v174 = vpop.permute.xlu0 %173
    %v176 = vmul.f32 %v35, %v174
    %178 = vrot.lane.b32.xlu0 %v176, 122
    %v179 = vpop.permute.xlu0 %178
    %v181 = vadd.f32 %v172, %v179
    %v182 = vtanh.pop %v181
    %183 = vst.msk [vmem:[#allocation2 + $0x7] sm:$0x1] %vm62, %v182
    %185 = vrot.lane.b32.xlu0 %v182, 127
    %v186 = vpop.permute.xlu0 %185
    %188 = vst.msk [vmem:[#allocation3] sm:$0x1] %vm68, %v186
    %v189 = vld [vmem:[#allocation4] sm:$0xff]
    %v190 = vld [vmem:[#allocation6] sm:$0x1]
    %v191 = vld [vmem:[#allocation6 + $0x1] sm:$0x1]
    %193 = vset.pattern.permute.xlu0 4
    %194 = vperm.xlu0 %193, %v189
    %v195 = vpop.permute.xlu0 %194
    %v197 = vlaneseq
    %v198 = vshrl.u32 %v197, 7
    %v199 = vsub.s32 0, %v198
    %v200 = vrot.slane %v191, %v199
    %v201 = vmul.f32 %v195, %v200
    %v202 = vlaneseq
    %v203 = vshrl.u32 %v202, 7
    %v204 = vsub.s32 0, %v203
    %v205 = vrot.slane %v190, %v204
    %v206 = vadd.f32 %v205, %v201
    %v207 = vld [vmem:[#allocation2] sm:$0xff]
    %v208 = vld [vmem:[#allocation6 + $0x2] sm:$0x1]
    %210 = vset.pattern.permute.xlu0 0
    %211 = vperm.xlu0 %210, %v207
    %v212 = vpop.permute.xlu0 %211
    %v214 = vlaneseq
    %v215 = vshrl.u32 %v214, 7
    %v216 = vsub.s32 0, %v215
    %v217 = vrot.slane %v208, %v216
    %v218 = vmul.f32 %v212, %v217
    %v219 = vadd.f32 %v206, %v218
    %v220 = vld [vmem:[#allocation3] sm:$0xff]
    %v221 = vld [vmem:[#allocation6 + $0x3] sm:$0x1]
    %223 = vset.pattern.permute.xlu0 0
    %224 = vperm.xlu0 %223, %v220
    %v225 = vpop.permute.xlu0 %224
    %v227 = vlaneseq
    %v228 = vshrl.u32 %v227, 7
    %v229 = vsub.s32 0, %v228
    %v230 = vrot.slane %v221, %v229
    %v231 = vmul.f32 %v225, %v230
    %v232 = vadd.f32 %v219, %v231
    %v233 = vtanh.pop %v232
    %v234 = vld [vmem:[#allocation6 + $0x4] sm:$0x1]
    %v235 = vlaneseq
    %v236 = vshrl.u32 %v235, 7
    %v237 = vsub.s32 0, %v236
    %v238 = vrot.slane %v234, %v237
    %v239 = vmul.f32 %v233, %v238
    %vm240 = vcmask 162816
    %v241 = vsel %vm240, %v239, 0.0
    %242 = vadd.xlane.f32.xlu0 %v241
    %v243 = vpop.xlane.xlu0 %242
    %v244 = vadd.f32 %v243, %v40
    %v245 = vxor.u32 %v244, 2147483648
    %v246 = vmul.f32 %v245, 1.442695
    %v247 = vpow.pop %v246
    %v248 = vadd.f32 %v247, 1.0
    %v249 = vrcp.pop %v248
    %v250 = vmul.f32 1.0, %v249
    %252 = vrot.lane.b32.xlu0 %v250, 120
    %v253 = vpop.permute.xlu0 %252
    %vm255 = vcmask 7168
    %256 = vst.msk [vmem:[%s2] sm:$0xff] %vm255, %v253
    // Predicated region
    $region18: #{tpu_custom_call.1} parent=1 // pred_check
      _
    $region19: #{tpu_custom_call.1} parent=1 // pred_check_branch
      %258 = sbr.rel (0) target = $region21
    $region20: #{tpu_custom_call.1} parent=1 // pred_region
      _
    $region21: #{tpu_custom_call.1} parent=1 // pred_fallthru
      _
    // Predicated region
    $region22: #{tpu_custom_call.1} parent=1 // pred_check
      _
    $region23: #{tpu_custom_call.1} parent=1 // pred_check_branch
      %260 = sbr.rel (0) target = $region25
    $region24: #{tpu_custom_call.1} parent=1 // pred_region
      _
    $region25: #{tpu_custom_call.1} parent=1 // pred_fallthru
      _
    %261 = vsyncpa [#allocation5], 1
    %262 = vsyncpa [#allocation7], 1

</llo_original>
